<compile_context>
chip_gen: v7x
topology: tpu7x:2x2x1
jax: 0.10.0
libtpu: 0.0.40
codegen_flags: <defaults>
</compile_context>

<pallas_src>
import jax
import jax.numpy as jnp
from jax.experimental import pallas as pl
from jax.experimental.pallas import tpu as pltpu

NUM_PIXELS = 28 * 28   # 784
HIDDEN = 48
OUT = 10
DROP_P = 0.2


def _round_up(x, m):
    return ((x + m - 1) // m) * m


def _softmax_rows(logits):
    m = jnp.max(logits, axis=-1, keepdims=True)
    e = jnp.exp(logits - m)
    return e / jnp.sum(e, axis=-1, keepdims=True)


def mlp_train_kernel(x_ref, w1_ref, b1_ref, mask_ref, w2_ref, b2_ref, o_ref):
    # hidden = relu(x @ W1 + b1); x/W1 are bf16, f32 accumulation on the MXU.
    h = jnp.dot(x_ref[...], w1_ref[...], preferred_element_type=jnp.float32)
    h = jnp.maximum(h + b1_ref[...], 0.0)
    # Dropout: 0/1 keep mask (precomputed host-side). 1/(1-p) is folded into W2.
    h = h * mask_ref[...].astype(jnp.float32)
    logits = jnp.dot(h, w2_ref[...], preferred_element_type=jnp.float32) + b2_ref[...]
    o_ref[...] = _softmax_rows(logits)


def mlp_eval_kernel(x_ref, w1_ref, b1_ref, w2_ref, b2_ref, o_ref):
    h = jnp.dot(x_ref[...], w1_ref[...], preferred_element_type=jnp.float32)
    h = jnp.maximum(h + b1_ref[...], 0.0)
    logits = jnp.dot(h, w2_ref[...], preferred_element_type=jnp.float32) + b2_ref[...]
    o_ref[...] = _softmax_rows(logits)


def neural_net_2(x, w1, b1, w2, b2, dropout_key=None, *, block_b=1024, training=True):
    """Forward pass of Neural_Net_2.

    x:  [B, 784] float32
    w1: [784, 48]  b1: [48]   (hidden layer, [in, out] layout)
    w2: [48, 10]   b2: [10]   (output layer, [in, out] layout)
    """
    B = x.shape[0]
    # Batch tile: multiple of 8 (sublane), capped at block_b (<=1024 keeps the
    # double-buffered x tile ~3 MiB, far inside the scoped VMEM limit on all chips).
    TB = min(block_b, _round_up(B, 8))
    Bp = _round_up(B, TB)

    # bf16 for the dominant HBM stream (x) and matching W1; f32 accumulation.
    # NOTE: bf16 input rounding is a tiny deviation from pure-f32 PyTorch.
    x_bf = x.astype(jnp.bfloat16)
    if Bp != B:
        x_bf = jnp.pad(x_bf, ((0, Bp - B), (0, 0)))
    w1_bf = w1.astype(jnp.bfloat16)
    b1_row = jnp.asarray(b1, jnp.float32).reshape(1, HIDDEN)
    b2_row = jnp.asarray(b2, jnp.float32).reshape(1, OUT)

    grid = (Bp // TB,)
    x_spec = pl.BlockSpec((TB, NUM_PIXELS), lambda i: (i, 0))        # pipelined x tile
    w1_spec = pl.BlockSpec((NUM_PIXELS, HIDDEN), lambda i: (0, 0))   # resident in VMEM
    b1_spec = pl.BlockSpec((1, HIDDEN), lambda i: (0, 0))
    w2_spec = pl.BlockSpec((HIDDEN, OUT), lambda i: (0, 0))
    b2_spec = pl.BlockSpec((1, OUT), lambda i: (0, 0))
    out_spec = pl.BlockSpec((TB, OUT), lambda i: (i, 0))
    cparams = pltpu.CompilerParams(dimension_semantics=("parallel",))

    matmul_flops = 2 * Bp * (NUM_PIXELS * HIDDEN + HIDDEN * OUT)
    weight_bytes = w1_bf.size * 2 + HIDDEN * 4 + HIDDEN * OUT * 4 + OUT * 4
    io_bytes = Bp * NUM_PIXELS * 2 + Bp * OUT * 4 + weight_bytes

    if training:
        if dropout_key is None:
            raise ValueError("training=True requires dropout_key")
        # PyTorch training-mode dropout: keep w.p. (1-p), scale by 1/(1-p).
        keep = jax.random.bernoulli(dropout_key, 1.0 - DROP_P, (Bp, HIDDEN))
        mask = keep.astype(jnp.bfloat16)
        w2_eff = jnp.asarray(w2, jnp.float32) * (1.0 / (1.0 - DROP_P))
        out = pl.pallas_call(
            mlp_train_kernel,
            out_shape=jax.ShapeDtypeStruct((Bp, OUT), jnp.float32),
            grid=grid,
            in_specs=[
                x_spec,
                w1_spec,
                b1_spec,
                pl.BlockSpec((TB, HIDDEN), lambda i: (i, 0)),        # dropout mask tile
                w2_spec,
                b2_spec,
            ],
            out_specs=out_spec,
            compiler_params=cparams,
            cost_estimate=pl.CostEstimate(
                flops=matmul_flops,
                transcendentals=Bp * OUT,
                bytes_accessed=io_bytes + Bp * HIDDEN * 2),
        )(x_bf, w1_bf, b1_row, mask, w2_eff, b2_row)
    else:
        # Eval mode: no dropout mask stream at all.
        w2_eff = jnp.asarray(w2, jnp.float32)
        out = pl.pallas_call(
            mlp_eval_kernel,
            out_shape=jax.ShapeDtypeStruct((Bp, OUT), jnp.float32),
            grid=grid,
            in_specs=[x_spec, w1_spec, b1_spec, w2_spec, b2_spec],
            out_specs=out_spec,
            compiler_params=cparams,
            cost_estimate=pl.CostEstimate(
                flops=matmul_flops,
                transcendentals=Bp * OUT,
                bytes_accessed=io_bytes),
        )(x_bf, w1_bf, b1_row, w2_eff, b2_row)

    return out[:B]


if __name__ == "__main__":
    key = jax.random.PRNGKey(0)
    kx, k1, k2, k3, k4, kd = jax.random.split(key, 6)

    B = 8
    x = jax.random.normal(kx, (B, NUM_PIXELS), dtype=jnp.float32)

    # Deterministic PyTorch-style init: U(-1/sqrt(fan_in), 1/sqrt(fan_in))
    bound1 = 1.0 / (NUM_PIXELS ** 0.5)
    w1 = jax.random.uniform(k1, (NUM_PIXELS, HIDDEN), jnp.float32, -bound1, bound1)
    b1 = jax.random.uniform(k2, (HIDDEN,), jnp.float32, -bound1, bound1)
    bound2 = 1.0 / (HIDDEN ** 0.5)
    w2 = jax.random.uniform(k3, (HIDDEN, OUT), jnp.float32, -bound2, bound2)
    b2 = jax.random.uniform(k4, (OUT,), jnp.float32, -bound2, bound2)

    # ---- training mode (dropout active, PyTorch default for this module) ----
    out = neural_net_2(x, w1, b1, w2, b2, kd, training=True)
    jax.block_until_ready(out)
    assert out.shape == (B, OUT)

    # Pure-JAX reference with identical bf16 rounding and identical dropout mask.
    keep = jax.random.bernoulli(kd, 1.0 - DROP_P, (B, HIDDEN)).astype(jnp.float32)
    x32 = x.astype(jnp.bfloat16).astype(jnp.float32)
    w1_32 = w1.astype(jnp.bfloat16).astype(jnp.float32)
    h_ref = jnp.maximum(x32 @ w1_32 + b1, 0.0) * keep * (1.0 / (1.0 - DROP_P))
    ref = jax.nn.softmax(h_ref @ w2 + b2, axis=-1)

    assert bool(jnp.all(jnp.isfinite(out)))
    assert jnp.allclose(jnp.sum(out, axis=-1), 1.0, atol=1e-4)
    assert jnp.allclose(out, ref, atol=2e-3, rtol=2e-3), float(jnp.max(jnp.abs(out - ref)))

    # ---- eval mode (dropout = identity, no mask stream) ----
    out_eval = neural_net_2(x, w1, b1, w2, b2, training=False)
    jax.block_until_ready(out_eval)
    h_ref_e = jnp.maximum(x32 @ w1_32 + b1, 0.0)
    ref_e = jax.nn.softmax(h_ref_e @ w2 + b2, axis=-1)
    assert jnp.allclose(out_eval, ref_e, atol=2e-3, rtol=2e-3)

    print("KERNEL_OK")
</pallas_src>

<mosaic_0001>
module attributes {stable_mosaic.version = 11 : i64} {
  func.func @mlp_train_kernel(%arg0: i32, %arg1: memref<8x784xbf16, #tpu.memory_space<vmem>>, %arg2: memref<784x48xbf16, #tpu.memory_space<vmem>>, %arg3: memref<1x48xf32, #tpu.memory_space<vmem>>, %arg4: memref<8x48xbf16, #tpu.memory_space<vmem>>, %arg5: memref<48x10xf32, #tpu.memory_space<vmem>>, %arg6: memref<1x10xf32, #tpu.memory_space<vmem>>, %arg7: memref<8x10xf32, #tpu.memory_space<vmem>>) attributes {dimension_semantics = [#tpu.dimension_semantics<parallel>], iteration_bounds = array<i64: 1>, scalar_prefetch = 0 : i64, scratch_operands = 0 : i64, tpu.core_type = #tpu.core_type<tc>, window_params = [{transform_indices = @transform_0, window_bounds = array<i64: 8, 784>}, {pipeline_mode = #tpu.pipeline_mode<synchronous>, transform_indices = @transform_1, window_bounds = array<i64: 784, 48>}, {pipeline_mode = #tpu.pipeline_mode<synchronous>, transform_indices = @transform_2, window_bounds = array<i64: 1, 48>}, {transform_indices = @transform_3, window_bounds = array<i64: 8, 48>}, {pipeline_mode = #tpu.pipeline_mode<synchronous>, transform_indices = @transform_4, window_bounds = array<i64: 48, 10>}, {pipeline_mode = #tpu.pipeline_mode<synchronous>, transform_indices = @transform_5, window_bounds = array<i64: 1, 10>}, {transform_indices = @transform_6, window_bounds = array<i64: 8, 10>}]} {
    %c0 = arith.constant 0 : index
    %c0_0 = arith.constant 0 : index
    %0 = vector.load %arg1[%c0, %c0_0] : memref<8x784xbf16, #tpu.memory_space<vmem>>, vector<8x784xbf16>
    %c0_1 = arith.constant 0 : index
    %c0_2 = arith.constant 0 : index
    %1 = vector.load %arg2[%c0_1, %c0_2] : memref<784x48xbf16, #tpu.memory_space<vmem>>, vector<784x48xbf16>
    %cst = arith.constant dense<0.000000e+00> : vector<8x48xf32>
    %2 = tpu.matmul %0, %1, %cst {dimension_numbers = #tpu.dot_dimension_numbers<[1], [0], [0], [1], [0, 0, 1, 1], [], []>} : vector<8x784xbf16>, vector<784x48xbf16>, vector<8x48xf32> -> vector<8x48xf32>
    %c0_3 = arith.constant 0 : index
    %c0_4 = arith.constant 0 : index
    %3 = vector.load %arg3[%c0_3, %c0_4] : memref<1x48xf32, #tpu.memory_space<vmem>>, vector<1x48xf32>
    %4 = vector.broadcast %3 : vector<1x48xf32> to vector<8x48xf32>
    %5 = arith.addf %2, %4 : vector<8x48xf32>
    %cst_5 = arith.constant 0.000000e+00 : f32
    %6 = vector.broadcast %cst_5 : f32 to vector<8x48xf32>
    %7 = arith.maximumf %5, %6 : vector<8x48xf32>
    %c0_6 = arith.constant 0 : index
    %c0_7 = arith.constant 0 : index
    %8 = vector.load %arg4[%c0_6, %c0_7] : memref<8x48xbf16, #tpu.memory_space<vmem>>, vector<8x48xbf16>
    %9 = arith.extf %8 : vector<8x48xbf16> to vector<8x48xf32>
    %10 = arith.mulf %7, %9 : vector<8x48xf32>
    %c0_8 = arith.constant 0 : index
    %c0_9 = arith.constant 0 : index
    %11 = vector.load %arg5[%c0_8, %c0_9] : memref<48x10xf32, #tpu.memory_space<vmem>>, vector<48x10xf32>
    %cst_10 = arith.constant dense<0.000000e+00> : vector<8x10xf32>
    %12 = tpu.matmul %10, %11, %cst_10 {dimension_numbers = #tpu.dot_dimension_numbers<[1], [0], [0], [1], [0, 0, 1, 1], [], []>} : vector<8x48xf32>, vector<48x10xf32>, vector<8x10xf32> -> vector<8x10xf32>
    %c0_11 = arith.constant 0 : index
    %c0_12 = arith.constant 0 : index
    %13 = vector.load %arg6[%c0_11, %c0_12] : memref<1x10xf32, #tpu.memory_space<vmem>>, vector<1x10xf32>
    %14 = vector.broadcast %13 : vector<1x10xf32> to vector<8x10xf32>
    %15 = arith.addf %12, %14 : vector<8x10xf32>
    %cst_13 = arith.constant dense<0xFF800000> : vector<8xf32>
    %16 = vector.multi_reduction <maximumf>, %15, %cst_13 [1] : vector<8x10xf32> to vector<8xf32>
    %17 = vector.shape_cast %16 : vector<8xf32> to vector<8x1xf32>
    %18 = vector.broadcast %17 : vector<8x1xf32> to vector<8x10xf32>
    %19 = arith.subf %15, %18 : vector<8x10xf32>
    %20 = math.exp %19 : vector<8x10xf32>
    %cst_14 = arith.constant dense<0.000000e+00> : vector<8xf32>
    %21 = vector.multi_reduction <add>, %20, %cst_14 [1] : vector<8x10xf32> to vector<8xf32>
    %22 = vector.shape_cast %21 : vector<8xf32> to vector<8x1xf32>
    %23 = vector.broadcast %22 : vector<8x1xf32> to vector<8x10xf32>
    %24 = arith.divf %20, %23 : vector<8x10xf32>
    %c0_15 = arith.constant 0 : index
    %c0_16 = arith.constant 0 : index
    %25 = vector.load %arg7[%c0_15, %c0_16] : memref<8x10xf32, #tpu.memory_space<vmem>>, vector<8x10xf32>
    tpu.vector_store %arg7[%c0_15, %c0_16], %24 {strides = array<i32>} : memref<8x10xf32, #tpu.memory_space<vmem>>, vector<8x10xf32>,
    return
  }
  func.func @transform_0(%arg0: i32) -> (i32, i32) {
    %c0_i32 = arith.constant 0 : i32
    %c0_i32_0 = arith.constant 0 : i32
    return %arg0, %c0_i32 : i32, i32
  }
  func.func @transform_1(%arg0: i32) -> (i32, i32) {
    %c0_i32 = arith.constant 0 : i32
    %c0_i32_0 = arith.constant 0 : i32
    %c0_i32_1 = arith.constant 0 : i32
    return %c0_i32, %c0_i32_0 : i32, i32
  }
  func.func @transform_2(%arg0: i32) -> (i32, i32) {
    %c0_i32 = arith.constant 0 : i32
    %c0_i32_0 = arith.constant 0 : i32
    %c0_i32_1 = arith.constant 0 : i32
    return %c0_i32, %c0_i32_0 : i32, i32
  }
  func.func @transform_3(%arg0: i32) -> (i32, i32) {
    %c0_i32 = arith.constant 0 : i32
    %c0_i32_0 = arith.constant 0 : i32
    return %arg0, %c0_i32 : i32, i32
  }
  func.func @transform_4(%arg0: i32) -> (i32, i32) {
    %c0_i32 = arith.constant 0 : i32
    %c0_i32_0 = arith.constant 0 : i32
    %c0_i32_1 = arith.constant 0 : i32
    return %c0_i32, %c0_i32_0 : i32, i32
  }
  func.func @transform_5(%arg0: i32) -> (i32, i32) {
    %c0_i32 = arith.constant 0 : i32
    %c0_i32_0 = arith.constant 0 : i32
    %c0_i32_1 = arith.constant 0 : i32
    return %c0_i32, %c0_i32_0 : i32, i32
  }
  func.func @transform_6(%arg0: i32) -> (i32, i32) {
    %c0_i32 = arith.constant 0 : i32
    %c0_i32_0 = arith.constant 0 : i32
    return %arg0, %c0_i32 : i32, i32
  }
}

</mosaic_0001>

<llo_original>
// kernel: tpu_custom_call.1
$region0: #{tpu_custom_call.1}
  #allocation0 [shape = 'u32[]', space=smem, size = 0x4, offset = 0x4, fixed_abs, tag = 'smem constant byte address 0x4 - core index']
  #allocation1 [shape = 'u32[144,128]{1,0:T(1,128)}', space=vmem, size = 0x12000, scoped, tag = 'internal scratch']
  %s0 = inlined_call_operand.vmem [shape: bf16[8,784], index: 0, kind: input, shape index: {}]
  %s1 = inlined_call_operand.vmem [shape: bf16[784,48], index: 1, kind: input, shape index: {}]
  %s2 = inlined_call_operand.vmem [shape: f32[1,48], index: 2, kind: input, shape index: {}]
  %s3 = inlined_call_operand.vmem [shape: bf16[8,48], index: 3, kind: input, shape index: {}]
  %s4 = inlined_call_operand.vmem [shape: f32[48,10], index: 4, kind: input, shape index: {}]
  %s5 = inlined_call_operand.vmem [shape: f32[1,10], index: 5, kind: input, shape index: {}]
  %s6 = inlined_call_operand.hbm [shape: f32[8,10], index: 6, kind: output, shape index: {}]
  %s7 = sld [smem:[#allocation0]]
  $region34: #{tpu_custom_call.1} parent=0
    _
  %s9 = ssub.s32 1, %s7
  %s10 = scalar_select 0, %s9, %s7
  $region1: #{tpu_custom_call.1} parent=0
    #allocation2 [shape = 'u8[4096]{0}', space=vmem, size = 0x1000, scoped, tag = 'output window, operand 0, single buffered']
    #allocation3 [shape = 's32[1]{0}', space=sflag, size = 0x4, scoped, tag = 'scoped memory for tpu_custom_call.1']
    %11 = vsyncpa [#allocation3], 0
    // Predicated region
    $region2: #{tpu_custom_call.1} parent=1 // pred_check
      _
    $region3: #{tpu_custom_call.1} parent=1 // pred_check_branch
      %13 = sbr.rel (0) target = $region5
    $region4: #{tpu_custom_call.1} parent=1 // pred_region
      _
    $region5: #{tpu_custom_call.1} parent=1 // pred_fallthru
      _
    // Predicated region
    $region6: #{tpu_custom_call.1} parent=1 // pred_check
      _
    $region7: #{tpu_custom_call.1} parent=1 // pred_check_branch
      %15 = sbr.rel (0) target = $region9
    $region8: #{tpu_custom_call.1} parent=1 // pred_region
      _
    $region9: #{tpu_custom_call.1} parent=1 // pred_fallthru
      _
    // Predicated region
    $region10: #{tpu_custom_call.1} parent=1 // pred_check
      _
    $region11: #{tpu_custom_call.1} parent=1 // pred_check_branch
      %17 = sbr.rel (0) target = $region13
    $region12: #{tpu_custom_call.1} parent=1 // pred_region
      _
    $region13: #{tpu_custom_call.1} parent=1 // pred_fallthru
      _
    // Predicated region
    $region14: #{tpu_custom_call.1} parent=1 // pred_check
      _
    $region15: #{tpu_custom_call.1} parent=1 // pred_check_branch
      %19 = sbr.rel (0) target = $region17
    $region16: #{tpu_custom_call.1} parent=1 // pred_region
      _
    $region17: #{tpu_custom_call.1} parent=1 // pred_fallthru
      _
    // Predicated region
    $region18: #{tpu_custom_call.1} parent=1 // pred_check
      _
    $region19: #{tpu_custom_call.1} parent=1 // pred_check_branch
      %21 = sbr.rel (0) target = $region21
    $region20: #{tpu_custom_call.1} parent=1 // pred_region
      _
    $region21: #{tpu_custom_call.1} parent=1 // pred_fallthru
      _
    // Predicated region
    $region22: #{tpu_custom_call.1} parent=1 // pred_check
      _
    $region23: #{tpu_custom_call.1} parent=1 // pred_check_branch
      %23 = sbr.rel (0) target = $region25
    $region24: #{tpu_custom_call.1} parent=1 // pred_region
      _
    $region25: #{tpu_custom_call.1} parent=1 // pred_fallthru
      _
    %v25 = vld [vmem:[%s0] sm:$0xff]
    %v26 = vld [vmem:[%s0 + $0x8] sm:$0xff]
    %v27 = vld [vmem:[%s0 + $0x10] sm:$0xff]
    %v28 = vld [vmem:[%s0 + $0x18] sm:$0xf]
    %v29 = vld [vmem:[%s1] sm:$0xf]
    %v30 = vld [vmem:[%s1 + $0x4] sm:$0xf]
    %v31 = vld [vmem:[%s1 + $0x8] sm:$0xf]
    %v32 = vld [vmem:[%s1 + $0xc] sm:$0xf]
    %v33 = vld [vmem:[%s1 + $0x10] sm:$0xf]
    %v34 = vld [vmem:[%s1 + $0x14] sm:$0xf]
    %v35 = vld [vmem:[%s1 + $0x18] sm:$0xf]
    %v36 = vld [vmem:[%s1 + $0x1c] sm:$0xf]
    %v37 = vld [vmem:[%s1 + $0x20] sm:$0xf]
    %v38 = vld [vmem:[%s1 + $0x24] sm:$0xf]
    %v39 = vld [vmem:[%s1 + $0x28] sm:$0xf]
    %v40 = vld [vmem:[%s1 + $0x2c] sm:$0xf]
    %v41 = vld [vmem:[%s1 + $0x30] sm:$0xf]
    %v42 = vld [vmem:[%s1 + $0x34] sm:$0xf]
    %v43 = vld [vmem:[%s1 + $0x38] sm:$0xf]
    %v44 = vld [vmem:[%s1 + $0x3c] sm:$0xf]
    %v45 = vld [vmem:[%s1 + $0x40] sm:$0xf]
    %v46 = vld [vmem:[%s1 + $0x44] sm:$0xf]
    %v47 = vld [vmem:[%s1 + $0x48] sm:$0xf]
    %v48 = vld [vmem:[%s1 + $0x4c] sm:$0xf]
    %v49 = vld [vmem:[%s1 + $0x50] sm:$0xf]
    %v50 = vld [vmem:[%s1 + $0x54] sm:$0xf]
    %v51 = vld [vmem:[%s1 + $0x58] sm:$0xf]
    %v52 = vld [vmem:[%s1 + $0x5c] sm:$0xf]
    %v53 = vld [vmem:[%s1 + $0x60] sm:$0xf]
    %v54 = vld [vmem:[%s1 + $0x64] sm:$0xf]
    %v55 = vld [vmem:[%s1 + $0x68] sm:$0xf]
    %v56 = vld [vmem:[%s1 + $0x6c] sm:$0xf]
    %v57 = vld [vmem:[%s1 + $0x70] sm:$0xf]
    %v58 = vld [vmem:[%s1 + $0x74] sm:$0xf]
    %v59 = vld [vmem:[%s1 + $0x78] sm:$0xf]
    %v60 = vld [vmem:[%s1 + $0x7c] sm:$0xf]
    %v61 = vld [vmem:[%s1 + $0x80] sm:$0xf]
    %v62 = vld [vmem:[%s1 + $0x84] sm:$0xf]
    %v63 = vld [vmem:[%s1 + $0x88] sm:$0xf]
    %v64 = vld [vmem:[%s1 + $0x8c] sm:$0xf]
    %v65 = vld [vmem:[%s1 + $0x90] sm:$0xf]
    %v66 = vld [vmem:[%s1 + $0x94] sm:$0xf]
    %v67 = vld [vmem:[%s1 + $0x98] sm:$0xf]
    %v68 = vld [vmem:[%s1 + $0x9c] sm:$0xf]
    %v69 = vld [vmem:[%s1 + $0xa0] sm:$0xf]
    %v70 = vld [vmem:[%s1 + $0xa4] sm:$0xf]
    %v71 = vld [vmem:[%s1 + $0xa8] sm:$0xf]
    %v72 = vld [vmem:[%s1 + $0xac] sm:$0xf]
    %v73 = vld [vmem:[%s1 + $0xb0] sm:$0xf]
    %v74 = vld [vmem:[%s1 + $0xb4] sm:$0xf]
    %v75 = vld [vmem:[%s1 + $0xb8] sm:$0xf]
    %v76 = vld [vmem:[%s1 + $0xbc] sm:$0xf]
    %v77 = vld [vmem:[%s1 + $0xc0] sm:$0xf]
    %v78 = vld [vmem:[%s1 + $0xc4] sm:$0xf]
    %v79 = vld [vmem:[%s1 + $0xc8] sm:$0xf]
    %v80 = vld [vmem:[%s1 + $0xcc] sm:$0xf]
    %v81 = vld [vmem:[%s1 + $0xd0] sm:$0xf]
    %v82 = vld [vmem:[%s1 + $0xd4] sm:$0xf]
    %v83 = vld [vmem:[%s1 + $0xd8] sm:$0xf]
    %v84 = vld [vmem:[%s1 + $0xdc] sm:$0xf]
    %v85 = vld [vmem:[%s1 + $0xe0] sm:$0xf]
    %v86 = vld [vmem:[%s1 + $0xe4] sm:$0xf]
    %v87 = vld [vmem:[%s1 + $0xe8] sm:$0xf]
    %v88 = vld [vmem:[%s1 + $0xec] sm:$0xf]
    %v89 = vld [vmem:[%s1 + $0xf0] sm:$0xf]
    %v90 = vld [vmem:[%s1 + $0xf4] sm:$0xf]
    %v91 = vld [vmem:[%s1 + $0xf8] sm:$0xf]
    %v92 = vld [vmem:[%s1 + $0xfc] sm:$0xf]
    %v93 = vld [vmem:[%s1 + $0x100] sm:$0xf]
    %v94 = vld [vmem:[%s1 + $0x104] sm:$0xf]
    %v95 = vld [vmem:[%s1 + $0x108] sm:$0xf]
    %v96 = vld [vmem:[%s1 + $0x10c] sm:$0xf]
    %v97 = vld [vmem:[%s1 + $0x110] sm:$0xf]
    %v98 = vld [vmem:[%s1 + $0x114] sm:$0xf]
    %v99 = vld [vmem:[%s1 + $0x118] sm:$0xf]
    %v100 = vld [vmem:[%s1 + $0x11c] sm:$0xf]
    %v101 = vld [vmem:[%s1 + $0x120] sm:$0xf]
    %v102 = vld [vmem:[%s1 + $0x124] sm:$0xf]
    %v103 = vld [vmem:[%s1 + $0x128] sm:$0xf]
    %v104 = vld [vmem:[%s1 + $0x12c] sm:$0xf]
    %v105 = vld [vmem:[%s1 + $0x130] sm:$0xf]
    %v106 = vld [vmem:[%s1 + $0x134] sm:$0xf]
    %v107 = vld [vmem:[%s1 + $0x138] sm:$0xf]
    %v108 = vld [vmem:[%s1 + $0x13c] sm:$0xf]
    %v109 = vld [vmem:[%s1 + $0x140] sm:$0xf]
    %v110 = vld [vmem:[%s1 + $0x144] sm:$0xf]
    %v111 = vld [vmem:[%s1 + $0x148] sm:$0xf]
    %v112 = vld [vmem:[%s1 + $0x14c] sm:$0xf]
    %v113 = vld [vmem:[%s1 + $0x150] sm:$0xf]
    %v114 = vld [vmem:[%s1 + $0x154] sm:$0xf]
    %v115 = vld [vmem:[%s1 + $0x158] sm:$0xf]
    %v116 = vld [vmem:[%s1 + $0x15c] sm:$0xf]
    %v117 = vld [vmem:[%s1 + $0x160] sm:$0xf]
    %v118 = vld [vmem:[%s1 + $0x164] sm:$0xf]
    %v119 = vld [vmem:[%s1 + $0x168] sm:$0xf]
    %v120 = vld [vmem:[%s1 + $0x16c] sm:$0xf]
    %v121 = vld [vmem:[%s1 + $0x170] sm:$0xf]
    %v122 = vld [vmem:[%s1 + $0x174] sm:$0xf]
    %v123 = vld [vmem:[%s1 + $0x178] sm:$0xf]
    %v124 = vld [vmem:[%s1 + $0x17c] sm:$0xf]
    %v125 = vld [vmem:[%s1 + $0x180] sm:$0xf]
    %v126 = vld [vmem:[%s1 + $0x184] sm:$0xf]
    %v127 = vld [vmem:[%s2] sm:$0x1]
    %v129 = vlaneseq
    %v130 = vshrl.u32 %v129, 7
    %v131 = vsub.s32 0, %v130
    %v132 = vrot.slane %v127, %v131
    %v138 = vunpack.c.l.b16 %v25
    %v139 = vunpack.c.h.b16 %v25
    %v140 = vunpack.c.l.b16 %v26
    %v141 = vunpack.c.h.b16 %v26
    %v142 = vunpack.c.l.b16 %v27
    %v143 = vunpack.c.h.b16 %v27
    %v144 = vunpack.c.l.b16 %v28
    %v145 = vpack.c.b16 %v138, %v138
    %v146 = vpack.c.b16 %v139, %v139
    %v147 = vpack.c.b16 %v140, %v140
    %v148 = vpack.c.b16 %v141, %v141
    %v149 = vpack.c.b16 %v142, %v142
    %v150 = vpack.c.b16 %v143, %v143
    %v151 = vpack.c.b16 %v144, %v144
    %v256 = vunpack.c.l.b16 %v29
    %v257 = vunpack.c.l.b16 %v30
    %v258 = vunpack.c.l.b16 %v31
    %v259 = vunpack.c.l.b16 %v32
    %v260 = vunpack.c.l.b16 %v33
    %v261 = vunpack.c.l.b16 %v34
    %v262 = vunpack.c.l.b16 %v35
    %v263 = vunpack.c.l.b16 %v36
    %v264 = vunpack.c.l.b16 %v37
    %v265 = vunpack.c.l.b16 %v38
    %v266 = vunpack.c.l.b16 %v39
    %v267 = vunpack.c.l.b16 %v40
    %v268 = vunpack.c.l.b16 %v41
    %v269 = vunpack.c.l.b16 %v42
    %v270 = vunpack.c.l.b16 %v43
    %v271 = vunpack.c.l.b16 %v44
    %v272 = vunpack.c.l.b16 %v45
    %v273 = vunpack.c.l.b16 %v46
    %v274 = vunpack.c.l.b16 %v47
    %v275 = vunpack.c.l.b16 %v48
    %v276 = vunpack.c.l.b16 %v49
    %v277 = vunpack.c.l.b16 %v50
    %v278 = vunpack.c.l.b16 %v51
    %v279 = vunpack.c.l.b16 %v52
    %v280 = vunpack.c.l.b16 %v53
    %v281 = vunpack.c.l.b16 %v54
    %v282 = vunpack.c.l.b16 %v55
    %v283 = vunpack.c.l.b16 %v56
    %v284 = vunpack.c.l.b16 %v57
    %v285 = vunpack.c.l.b16 %v58
    %v286 = vunpack.c.l.b16 %v59
    %v287 = vunpack.c.l.b16 %v60
    %v288 = vunpack.c.l.b16 %v61
    %v289 = vunpack.c.l.b16 %v62
    %v290 = vunpack.c.l.b16 %v63
    %v291 = vunpack.c.l.b16 %v64
    %v292 = vunpack.c.l.b16 %v65
    %v293 = vunpack.c.l.b16 %v66
    %v294 = vunpack.c.l.b16 %v67
    %v295 = vunpack.c.l.b16 %v68
    %v296 = vunpack.c.l.b16 %v69
    %v297 = vunpack.c.l.b16 %v70
    %v298 = vunpack.c.l.b16 %v71
    %v299 = vunpack.c.l.b16 %v72
    %v300 = vunpack.c.l.b16 %v73
    %v301 = vunpack.c.l.b16 %v74
    %v302 = vunpack.c.l.b16 %v75
    %v303 = vunpack.c.l.b16 %v76
    %v304 = vunpack.c.l.b16 %v77
    %v305 = vunpack.c.l.b16 %v78
    %v306 = vunpack.c.l.b16 %v79
    %v307 = vunpack.c.l.b16 %v80
    %v308 = vunpack.c.l.b16 %v81
    %v309 = vunpack.c.l.b16 %v82
    %v310 = vunpack.c.l.b16 %v83
    %v311 = vunpack.c.l.b16 %v84
    %v312 = vunpack.c.l.b16 %v85
    %v313 = vunpack.c.l.b16 %v86
    %v314 = vunpack.c.l.b16 %v87
    %v315 = vunpack.c.l.b16 %v88
    %v316 = vunpack.c.l.b16 %v89
    %v317 = vunpack.c.l.b16 %v90
    %v318 = vunpack.c.l.b16 %v91
    %v319 = vunpack.c.l.b16 %v92
    %v320 = vunpack.c.l.b16 %v93
    %v321 = vunpack.c.l.b16 %v94
    %v322 = vunpack.c.l.b16 %v95
    %v323 = vunpack.c.l.b16 %v96
    %v324 = vunpack.c.l.b16 %v97
    %v325 = vunpack.c.l.b16 %v98
    %v326 = vunpack.c.l.b16 %v99
    %v327 = vunpack.c.l.b16 %v100
    %v328 = vunpack.c.l.b16 %v101
    %v329 = vunpack.c.l.b16 %v102
    %v330 = vunpack.c.l.b16 %v103
    %v331 = vunpack.c.l.b16 %v104
    %v332 = vunpack.c.l.b16 %v105
    %v333 = vunpack.c.l.b16 %v106
    %v334 = vunpack.c.l.b16 %v107
    %v335 = vunpack.c.l.b16 %v108
    %v336 = vunpack.c.l.b16 %v109
    %v337 = vunpack.c.l.b16 %v110
    %v338 = vunpack.c.l.b16 %v111
    %v339 = vunpack.c.l.b16 %v112
    %v340 = vunpack.c.l.b16 %v113
    %v341 = vunpack.c.l.b16 %v114
    %v342 = vunpack.c.l.b16 %v115
    %v343 = vunpack.c.l.b16 %v116
    %v344 = vunpack.c.l.b16 %v117
    %v345 = vunpack.c.l.b16 %v118
    %v346 = vunpack.c.l.b16 %v119
    %v347 = vunpack.c.l.b16 %v120
    %v348 = vunpack.c.l.b16 %v121
    %v349 = vunpack.c.l.b16 %v122
    %v350 = vunpack.c.l.b16 %v123
    %v351 = vunpack.c.l.b16 %v124
    %v352 = vunpack.c.l.b16 %v125
    %v353 = vunpack.c.l.b16 %v126
    %v354 = vpack.c.b16 %v257, %v256
    %v355 = vpack.c.b16 %v259, %v258
    %v356 = vpack.c.b16 %v261, %v260
    %v357 = vpack.c.b16 %v263, %v262
    %v358 = vpack.c.b16 %v265, %v264
    %v359 = vpack.c.b16 %v267, %v266
    %v360 = vpack.c.b16 %v269, %v268
    %v361 = vpack.c.b16 %v271, %v270
    %v362 = vpack.c.b16 %v273, %v272
    %v363 = vpack.c.b16 %v275, %v274
    %v364 = vpack.c.b16 %v277, %v276
    %v365 = vpack.c.b16 %v279, %v278
    %v366 = vpack.c.b16 %v281, %v280
    %v367 = vpack.c.b16 %v283, %v282
    %v368 = vpack.c.b16 %v285, %v284
    %v369 = vpack.c.b16 %v287, %v286
    %v370 = vpack.c.b16 %v289, %v288
    %v371 = vpack.c.b16 %v291, %v290
    %v372 = vpack.c.b16 %v293, %v292
    %v373 = vpack.c.b16 %v295, %v294
    %v374 = vpack.c.b16 %v297, %v296
    %v375 = vpack.c.b16 %v299, %v298
    %v376 = vpack.c.b16 %v301, %v300
    %v377 = vpack.c.b16 %v303, %v302
    %v378 = vpack.c.b16 %v305, %v304
    %v379 = vpack.c.b16 %v307, %v306
    %v380 = vpack.c.b16 %v309, %v308
    %v381 = vpack.c.b16 %v311, %v310
    %v382 = vpack.c.b16 %v313, %v312
    %v383 = vpack.c.b16 %v315, %v314
    %v384 = vpack.c.b16 %v317, %v316
    %v385 = vpack.c.b16 %v319, %v318
    %v386 = vpack.c.b16 %v321, %v320
    %v387 = vpack.c.b16 %v323, %v322
    %v388 = vpack.c.b16 %v325, %v324
    %v389 = vpack.c.b16 %v327, %v326
    %v390 = vpack.c.b16 %v329, %v328
    %v391 = vpack.c.b16 %v331, %v330
    %v392 = vpack.c.b16 %v333, %v332
    %v393 = vpack.c.b16 %v335, %v334
    %v394 = vpack.c.b16 %v337, %v336
    %v395 = vpack.c.b16 %v339, %v338
    %v396 = vpack.c.b16 %v341, %v340
    %v397 = vpack.c.b16 %v343, %v342
    %v398 = vpack.c.b16 %v345, %v344
    %v399 = vpack.c.b16 %v347, %v346
    %v400 = vpack.c.b16 %v349, %v348
    %v401 = vpack.c.b16 %v351, %v350
    %v402 = vpack.c.b16 %v353, %v352
    %vm452 = vcmask 130048
    %v454 = vsel %vm452, %v151, 0
    %456 = vmatprep.subr.bf16.mxu0 0
    %457 = vmatpush1.bf16.msra.mxu0 %v354
    %458 = vmatprep.subr.bf16.mxu0 0
    %459 = vmatpush1.bf16.msra.mxu0 %v355
    %460 = vmatprep.subr.bf16.mxu0 0
    %461 = vmatpush1.bf16.msra.mxu0 %v356
    %462 = vmatprep.subr.bf16.mxu0 0
    %463 = vmatpush1.bf16.msra.mxu0 %v357
    %464 = vmatprep.subr.bf16.mxu0 0
    %465 = vmatpush1.bf16.msra.mxu0 %v358
    %466 = vmatprep.subr.bf16.mxu0 0
    %467 = vmatpush1.bf16.msra.mxu0 %v359
    %468 = vmatprep.subr.bf16.mxu0 0
    %469 = vmatpush1.bf16.msra.mxu0 %v360
    %470 = vmatprep.subr.bf16.mxu0 0
    %471 = vmatpush1.bf16.msra.mxu0 %v361
    %472 = vmatprep.subr.bf16.mxu0 0
    %473 = vmatpush1.bf16.msra.mxu0 %v362
    %474 = vmatprep.subr.bf16.mxu0 0
    %475 = vmatpush1.bf16.msra.mxu0 %v363
    %476 = vmatprep.subr.bf16.mxu0 0
    %477 = vmatpush1.bf16.msra.mxu0 %v364
    %478 = vmatprep.subr.bf16.mxu0 0
    %479 = vmatpush1.bf16.msra.mxu0 %v365
    %480 = vmatprep.subr.bf16.mxu0 0
    %481 = vmatpush1.bf16.msra.mxu0 %v366
    %482 = vmatprep.subr.bf16.mxu0 0
    %483 = vmatpush1.bf16.msra.mxu0 %v367
    %484 = vmatprep.subr.bf16.mxu0 0
    %485 = vmatpush1.bf16.msra.mxu0 %v368
    %486 = vmatprep.subr.bf16.mxu0 0
    %487 = vmatpush1.bf16.msra.mxu0 %v369
    %488 = vmatprep.mubr.bf16.mxu0 %v146
    %489 = vmatmul.mubr.bf16.gmra.mrb[0].mxu0 %v145
    %v490 = vpop.f32.mrb[0].mxu0
    %v491 = vadd.f32 %v132, %v490
    %v492 = vpop.f32.mrb[0].mxu0
    %v493 = vpop.f32.mrb[0].mxu0
    %v494 = vpop.f32.mrb[0].mxu0
    %495 = vdwg.mxu0
    %496 = vmatprep.subr.bf16.mxu0 0
    %497 = vmatpush1.bf16.msra.mxu0 %v370
    %498 = vmatprep.subr.bf16.mxu0 0
    %499 = vmatpush1.bf16.msra.mxu0 %v371
    %500 = vmatprep.subr.bf16.mxu0 0
    %501 = vmatpush1.bf16.msra.mxu0 %v372
    %502 = vmatprep.subr.bf16.mxu0 0
    %503 = vmatpush1.bf16.msra.mxu0 %v373
    %504 = vmatprep.subr.bf16.mxu0 0
    %505 = vmatpush1.bf16.msra.mxu0 %v374
    %506 = vmatprep.subr.bf16.mxu0 0
    %507 = vmatpush1.bf16.msra.mxu0 %v375
    %508 = vmatprep.subr.bf16.mxu0 0
    %509 = vmatpush1.bf16.msra.mxu0 %v376
    %510 = vmatprep.subr.bf16.mxu0 0
    %511 = vmatpush1.bf16.msra.mxu0 %v377
    %512 = vmatprep.subr.bf16.mxu0 0
    %513 = vmatpush1.bf16.msra.mxu0 %v378
    %514 = vmatprep.subr.bf16.mxu0 0
    %515 = vmatpush1.bf16.msra.mxu0 %v379
    %516 = vmatprep.subr.bf16.mxu0 0
    %517 = vmatpush1.bf16.msra.mxu0 %v380
    %518 = vmatprep.subr.bf16.mxu0 0
    %519 = vmatpush1.bf16.msra.mxu0 %v381
    %520 = vmatprep.subr.bf16.mxu0 0
    %521 = vmatpush1.bf16.msra.mxu0 %v382
    %522 = vmatprep.subr.bf16.mxu0 0
    %523 = vmatpush1.bf16.msra.mxu0 %v383
    %524 = vmatprep.subr.bf16.mxu0 0
    %525 = vmatpush1.bf16.msra.mxu0 %v384
    %526 = vmatprep.subr.bf16.mxu0 0
    %527 = vmatpush1.bf16.msra.mxu0 %v385
    %528 = vmatprep.mubr.bf16.mxu0 %v148
    %529 = vmatmul.mubr.bf16.gmra.mrb[0].mxu0 %v147
    %v530 = vpop.f32.mrb[0].mxu0
    %v531 = vadd.f32 %v491, %v530
    %v532 = vpop.f32.mrb[0].mxu0
    %v533 = vpop.f32.mrb[0].mxu0
    %v534 = vpop.f32.mrb[0].mxu0
    %535 = vdwg.mxu0
    %536 = vmatprep.subr.bf16.mxu0 0
    %537 = vmatpush1.bf16.msra.mxu0 %v386
    %538 = vmatprep.subr.bf16.mxu0 0
    %539 = vmatpush1.bf16.msra.mxu0 %v387
    %540 = vmatprep.subr.bf16.mxu0 0
    %541 = vmatpush1.bf16.msra.mxu0 %v388
    %542 = vmatprep.subr.bf16.mxu0 0
    %543 = vmatpush1.bf16.msra.mxu0 %v389
    %544 = vmatprep.subr.bf16.mxu0 0
    %545 = vmatpush1.bf16.msra.mxu0 %v390
    %546 = vmatprep.subr.bf16.mxu0 0
    %547 = vmatpush1.bf16.msra.mxu0 %v391
    %548 = vmatprep.subr.bf16.mxu0 0
    %549 = vmatpush1.bf16.msra.mxu0 %v392
    %550 = vmatprep.subr.bf16.mxu0 0
    %551 = vmatpush1.bf16.msra.mxu0 %v393
    %552 = vmatprep.subr.bf16.mxu0 0
    %553 = vmatpush1.bf16.msra.mxu0 %v394
    %554 = vmatprep.subr.bf16.mxu0 0
    %555 = vmatpush1.bf16.msra.mxu0 %v395
    %556 = vmatprep.subr.bf16.mxu0 0
    %557 = vmatpush1.bf16.msra.mxu0 %v396
    %558 = vmatprep.subr.bf16.mxu0 0
    %559 = vmatpush1.bf16.msra.mxu0 %v397
    %560 = vmatprep.subr.bf16.mxu0 0
    %561 = vmatpush1.bf16.msra.mxu0 %v398
    %562 = vmatprep.subr.bf16.mxu0 0
    %563 = vmatpush1.bf16.msra.mxu0 %v399
    %564 = vmatprep.subr.bf16.mxu0 0
    %565 = vmatpush1.bf16.msra.mxu0 %v400
    %566 = vmatprep.subr.bf16.mxu0 0
    %567 = vmatpush1.bf16.msra.mxu0 %v401
    %568 = vmatprep.mubr.bf16.mxu0 %v150
    %569 = vmatmul.mubr.bf16.gmra.mrb[0].mxu0 %v149
    %v570 = vpop.f32.mrb[0].mxu0
    %v571 = vadd.f32 %v531, %v570
    %v572 = vpop.f32.mrb[0].mxu0
    %v573 = vpop.f32.mrb[0].mxu0
    %v574 = vpop.f32.mrb[0].mxu0
    %575 = vdwg.mxu0
    %576 = vmatprep.subr.bf16.mxu0 0
    %577 = vmatpush1.bf16.msra.mxu0 %v402
    %578 = vmatprep.subr.bf16.mxu0 0
    %579 = vmatpush1.bf16.msra.mxu0 0
    %580 = vmatprep.subr.bf16.mxu0 0
    %581 = vmatpush1.bf16.msra.mxu0 0
    %582 = vmatprep.subr.bf16.mxu0 0
    %583 = vmatpush1.bf16.msra.mxu0 0
    %584 = vmatprep.subr.bf16.mxu0 0
    %585 = vmatpush1.bf16.msra.mxu0 0
    %586 = vmatprep.subr.bf16.mxu0 0
    %587 = vmatpush1.bf16.msra.mxu0 0
    %588 = vmatprep.subr.bf16.mxu0 0
    %589 = vmatpush1.bf16.msra.mxu0 0
    %590 = vmatprep.subr.bf16.mxu0 0
    %591 = vmatpush1.bf16.msra.mxu0 0
    %592 = vmatprep.subr.bf16.mxu0 0
    %593 = vmatpush1.bf16.msra.mxu0 0
    %594 = vmatprep.subr.bf16.mxu0 0
    %595 = vmatpush1.bf16.msra.mxu0 0
    %596 = vmatprep.subr.bf16.mxu0 0
    %597 = vmatpush1.bf16.msra.mxu0 0
    %598 = vmatprep.subr.bf16.mxu0 0
    %599 = vmatpush1.bf16.msra.mxu0 0
    %600 = vmatprep.subr.bf16.mxu0 0
    %601 = vmatpush1.bf16.msra.mxu0 0
    %602 = vmatprep.subr.bf16.mxu0 0
    %603 = vmatpush1.bf16.msra.mxu0 0
    %604 = vmatprep.subr.bf16.mxu0 0
    %605 = vmatpush1.bf16.msra.mxu0 0
    %606 = vmatprep.subr.bf16.mxu0 0
    %607 = vmatpush1.bf16.msra.mxu0 0
    %608 = vmatprep.mubr.bf16.mxu0 0
    %609 = vmatmul.mubr.bf16.gmra.mrb[0].mxu0 %v454
    %v610 = vpop.f32.mrb[0].mxu0
    %v611 = vadd.f32 %v571, %v610
    %v612 = vpop.f32.mrb[0].mxu0
    %v613 = vpop.f32.mrb[0].mxu0
    %v614 = vpop.f32.mrb[0].mxu0
    %615 = vdwg.mxu0
    %v616 = vmax.f32 %v611, 0.0
    %v617 = vld [vmem:[%s3] sm:$0xf]
    %v618 = vunpack.c.l.bf16 %v617
    %v619 = vmul.f32 %v616, %v618
    %v620 = vld [vmem:[%s4] sm:$0xff]
    %v621 = vld [vmem:[%s4 + $0x8] sm:$0xff]
    %v622 = vld [vmem:[%s4 + $0x10] sm:$0xff]
    %v623 = vld [vmem:[%s4 + $0x18] sm:$0xff]
    %v624 = vld [vmem:[%s4 + $0x20] sm:$0xff]
    %v625 = vld [vmem:[%s4 + $0x28] sm:$0xff]
    %v626 = vld [vmem:[%s5] sm:$0x1]
    %v628 = vlaneseq
    %v629 = vshrl.u32 %v628, 7
    %v630 = vsub.s32 0, %v629
    %v631 = vrot.slane %v626, %v630
    %vm633 = vcmask 392192
    %v635 = vsel %vm633, %v619, 0
    %637 = vmatprep.subr.mxu0 0.0
    %638 = vmatpush1.msra.mxu0 %v620
    %639 = vmatprep.subr.mxu0 0.0
    %640 = vmatpush1.msra.mxu0 %v621
    %641 = vmatprep.subr.mxu0 0.0
    %642 = vmatpush1.msra.mxu0 %v622
    %643 = vmatprep.subr.mxu0 0.0
    %644 = vmatpush1.msra.mxu0 %v623
    %645 = vmatprep.subr.mxu0 0.0
    %646 = vmatpush1.msra.mxu0 %v624
    %647 = vmatprep.subr.mxu0 0.0
    %648 = vmatpush1.msra.mxu0 %v625
    %649 = vmatprep.subr.mxu0 0.0
    %650 = vmatpush1.msra.mxu0 0.0
    %651 = vmatprep.subr.mxu0 0.0
    %652 = vmatpush1.msra.mxu0 0.0
    %653 = vmatprep.subr.mxu0 0.0
    %654 = vmatpush1.msra.mxu0 0.0
    %655 = vmatprep.subr.mxu0 0.0
    %656 = vmatpush1.msra.mxu0 0.0
    %657 = vmatprep.subr.mxu0 0.0
    %658 = vmatpush1.msra.mxu0 0.0
    %659 = vmatprep.subr.mxu0 0.0
    %660 = vmatpush1.msra.mxu0 0.0
    %661 = vmatprep.subr.mxu0 0.0
    %662 = vmatpush1.msra.mxu0 0.0
    %663 = vmatprep.subr.mxu0 0.0
    %664 = vmatpush1.msra.mxu0 0.0
    %665 = vmatprep.subr.mxu0 0.0
    %666 = vmatpush1.msra.mxu0 0.0
    %667 = vmatprep.subr.mxu0 0.0
    %668 = vmatpush1.msra.mxu0 0.0
    %669 = vmatprep.subr.mxu0 0.0
    %670 = vmatpush1.msra.mxu0 0.0
    %671 = vmatprep.subr.mxu0 0.0
    %672 = vmatpush1.msra.mxu0 0.0
    %673 = vmatprep.subr.mxu0 0.0
    %674 = vmatpush1.msra.mxu0 0.0
    %675 = vmatprep.subr.mxu0 0.0
    %676 = vmatpush1.msra.mxu0 0.0
    %677 = vmatprep.subr.mxu0 0.0
    %678 = vmatpush1.msra.mxu0 0.0
    %679 = vmatprep.subr.mxu0 0.0
    %680 = vmatpush1.msra.mxu0 0.0
    %681 = vmatprep.subr.mxu0 0.0
    %682 = vmatpush1.msra.mxu0 0.0
    %683 = vmatprep.subr.mxu0 0.0
    %684 = vmatpush1.msra.mxu0 0.0
    %685 = vmatprep.subr.mxu0 0.0
    %686 = vmatpush1.msra.mxu0 0.0
    %687 = vmatprep.subr.mxu0 0.0
    %688 = vmatpush1.msra.mxu0 0.0
    %689 = vmatprep.subr.mxu0 0.0
    %690 = vmatpush1.msra.mxu0 0.0
    %691 = vmatprep.subr.mxu0 0.0
    %692 = vmatpush1.msra.mxu0 0.0
    %693 = vmatprep.subr.mxu0 0.0
    %694 = vmatpush1.msra.mxu0 0.0
    %695 = vmatprep.subr.mxu0 0.0
    %696 = vmatpush1.msra.mxu0 0.0
    %697 = vmatprep.subr.mxu0 0.0
    %698 = vmatpush1.msra.mxu0 0.0
    %699 = vmatprep.subr.mxu0 0.0
    %700 = vmatpush1.msra.mxu0 0.0
    %701 = vmatprep.mubr.f32.mxu0 0.0
    %702 = vmatmul.mubr.f32.gmra.mrb[0].mxu0 %v635
    %v703 = vpop.f32.mrb[0].mxu0
    %v704 = vadd.f32 %v631, %v703
    %v705 = vpop.f32.mrb[0].mxu0
    %706 = vdwg.mxu0
    %vm707 = vcmask 80896
    %v708 = vsel %vm707, %v704, -inf
    %709 = vmax.xlane.f32.xlu0 %v708
    %v710 = vpop.xlane.xlu0 %709
    %v711 = vsub.f32 %v704, %v710
    %v712 = vmul.f32 %v711, 1.442695
    %v713 = vpow.pop %v712
    %v714 = vsel %vm707, %v713, 0.0
    %715 = vadd.xlane.f32.xlu0 %v714
    %v716 = vpop.xlane.xlu0 %715
    %v717 = vrcp.pop %v716
    %v718 = vmul.f32 %v713, %v717
    %719 = vst.msk [vmem:[#allocation2] sm:$0xff] %vm707, %v718
    // Predicated region
    $region26: #{tpu_custom_call.1} parent=1 // pred_check
      _
    $region27: #{tpu_custom_call.1} parent=1 // pred_check_branch
      %721 = sbr.rel (0) target = $region29
    $region28: #{tpu_custom_call.1} parent=1 // pred_region
      %s723 = ssub.s32 128, 128
      %724 = vsyncadd [#allocation3], %s723
      %s726 = sshll.u32 [#allocation2], 4
      %s727 = int_to_ptr.vmem [resolvable:$true] %s726
      %729 = dma.vmem_to_hbm [thread:$0]  %s727, 128, %s6, [#allocation3]
    $region29: #{tpu_custom_call.1} parent=1 // pred_fallthru
      _
    // Predicated region
    $region30: #{tpu_custom_call.1} parent=1 // pred_check
      _
    $region31: #{tpu_custom_call.1} parent=1 // pred_check_branch
      %731 = sbr.rel (0) target = $region33
    $region32: #{tpu_custom_call.1} parent=1 // pred_region
      %732 = dma.done [#allocation3], 128
    $region33: #{tpu_custom_call.1} parent=1 // pred_fallthru
      _
    %733 = vsyncpa [#allocation3], 1

</llo_original>
